<compile_context>
chip_gen: v5e
topology: v5e:2x2
jax: 0.10.0
libtpu: 0.0.40
codegen_flags: <defaults>
</compile_context>

<pallas_src>
import jax
import jax.numpy as jnp
from jax import lax
from jax.experimental import pallas as pl
from jax.experimental.pallas import tpu as pltpu

_LANE = 128
_CHUNK_ROWS = 64                      # 64 x 128 f32 = 32 KiB per input per inner step
_TARGET_BLOCK_ROWS = 4096             # ~2 MiB f32 per input per block
_VMEM_LIMIT_BYTES = 32 * 1024 * 1024  # 3 inputs x 2 bufs x 2 MiB + slack; fits all chips
_FUSE_BYTES_LIMIT = 16 * 1024 * 1024  # stack-fuse images only while the copy is cheap


def _round_up(x, m):
    return ((x + m - 1) // m) * m


def _pick_block_rows(total_rows):
    """~2 MiB (f32) blocks, capped so the parallel grid has >=2 blocks (v7x megacore)."""
    half = _round_up(pl.cdiv(total_rows, 2), _CHUNK_ROWS)
    return max(_CHUNK_ROWS, min(_TARGET_BLOCK_ROWS, half))


# ------------------------------ Pallas kernel ------------------------------- #
def _make_mse_partial_kernel(block_rows, chunk_rows, tail_rows, masked):
    """Kernel computing an (8,128) partial sum of (p - t)**2 [* m] per block.

    block_rows : rows per input block (multiple of chunk_rows).
    chunk_rows : rows reduced per inner-loop step (bounds live vregs; avoids
                 materializing big VMEM temporaries).
    tail_rows  : valid rows of the LAST (partial) block, or None if all blocks
                 are full.  Static closure constant -> no scalar prefetch.
    masked     : whether a third (mask) input ref is present.
    """
    assert block_rows % chunk_rows == 0 and chunk_rows % 8 == 0
    num_chunks = block_rows // chunk_rows

    def kernel(*refs):
        if masked:
            p_ref, t_ref, m_ref, o_ref = refs
        else:
            p_ref, t_ref, o_ref = refs
            m_ref = None

        if tail_rows is not None:
            # Rows >= valid_rows of the last block were never DMA'd (partial
            # block): they hold stale VMEM data, so zero them with a select
            # (safe even if the stale data is NaN/Inf, unlike a multiply).
            is_last = pl.program_id(0) == pl.num_programs(0) - 1
            valid_rows = jnp.where(is_last, tail_rows, block_rows)
            base_row = lax.broadcasted_iota(jnp.int32, (chunk_rows, _LANE), 0)

        def body(c, acc):
            r0 = pl.multiple_of(c * chunk_rows, chunk_rows)
            row_slice = pl.ds(r0, chunk_rows)
            # Native-dtype loads; cast to f32 on the VPU (free next to HBM DMA).
            d = (p_ref[row_slice, :].astype(jnp.float32)
                 - t_ref[row_slice, :].astype(jnp.float32))
            sq = d * d
            if masked:
                sq = sq * m_ref[row_slice, :].astype(jnp.float32)
            if tail_rows is not None:
                sq = jnp.where(r0 + base_row < valid_rows, sq, 0.0)
            # (chunk,128) -> (chunk/8, 8, 128) is a layout-free leading-axis
            # split; axis-0 sum is whole-vreg VPU adds (no XLU, no spills).
            return acc + jnp.sum(sq.reshape(-1, 8, _LANE), axis=0)

        acc = lax.fori_loop(0, num_chunks, body,
                            jnp.zeros((8, _LANE), jnp.float32))
        o_ref[...] = acc[None]

    return kernel


# --------------------------------- wrapper ----------------------------------- #
def mse_sum(pred, target, mask=None, *, block_rows=None):
    """sum((pred - target)**2 [* mask]) via a single Pallas TPU kernel.

    pred/target/mask are streamed in their native dtypes.  `mask` (if given)
    must broadcast against pred.shape with right-aligned (numpy/torch)
    broadcasting, e.g. (H, W, 1) against (H, W, C).
    """
    if pred.shape != target.shape:
        raise ValueError(f"pred {pred.shape} vs target {target.shape}")
    n = int(pred.size)

    flats = [pred.reshape(-1), target.reshape(-1)]
    if mask is not None:
        if mask.dtype == jnp.bool_:
            # Compact-dtype cast on the small mask: avoids 1-bit refs in-kernel
            # while keeping the broadcast stream at 1 byte/element.
            mask = mask.astype(jnp.int8)
        # TODO(synk): fully avoiding this broadcast needs an in-kernel lane
        # expansion by C, which does not tile cleanly for channel-last C=3;
        # broadcasting in the compact dtype already cuts the extra HBM bytes
        # ~4x for bool masks versus the old f32 broadcast.
        flats.append(jnp.broadcast_to(mask, pred.shape).reshape(-1))

    # Lane alignment only (not block alignment): pad flat streams to a multiple
    # of 128.  Usually a no-op for image shapes; zero padding is exact because
    # padded pred == target == 0 (and padded mask == 0).
    n_pad = _round_up(max(n, _LANE), _LANE)
    if n_pad != n:
        flats = [jnp.pad(f, (0, n_pad - n)) for f in flats]
    rows = n_pad // _LANE
    mats = [f.reshape(rows, _LANE) for f in flats]

    if block_rows is None:
        block_rows = _pick_block_rows(rows)
    else:
        block_rows = _round_up(int(block_rows), _CHUNK_ROWS)

    if rows < block_rows:
        # Tiny input: pad rows up to a single full block (cheap) rather than
        # asking for a block window larger than the array itself.
        mats = [jnp.pad(m, ((0, block_rows - rows), (0, 0))) for m in mats]
        rows = block_rows

    num_blocks = pl.cdiv(rows, block_rows)
    tail = rows - (num_blocks - 1) * block_rows
    tail_rows = None if tail == block_rows else tail

    kernel = _make_mse_partial_kernel(block_rows, _CHUNK_ROWS, tail_rows,
                                      mask is not None)

    in_spec = pl.BlockSpec((block_rows, _LANE), lambda i: (i, 0))
    # TODO(synk): on v7x, pipeline_mode=pl.Buffered(3) on the input specs is a
    # cheap thing to try if profiling shows exposed DMA at step boundaries.
    partials = pl.pallas_call(
        kernel,
        out_shape=jax.ShapeDtypeStruct((num_blocks, 8, _LANE), jnp.float32),
        grid_spec=pltpu.PrefetchScalarGridSpec(
            num_scalar_prefetch=0,
            grid=(num_blocks,),
            in_specs=[in_spec] * len(mats),
            # Independent, lane-dense per-block partials -> the grid axis stays
            # "parallel" (megacore shards it); final reduce is a tiny jnp.sum.
            out_specs=pl.BlockSpec((1, 8, _LANE), lambda i: (i, 0, 0)),
        ),
        compiler_params=pltpu.CompilerParams(
            dimension_semantics=("parallel",),
            vmem_limit_bytes=_VMEM_LIMIT_BYTES,
        ),
    )(*mats)
    return jnp.sum(partials)


# ------------------------------- loss module --------------------------------- #
class RGBLossMSE:
    """JAX/Pallas port of the PyTorch RGBLossMSE forward pass."""

    # TODO(synk): BaseLoss weight-scheduling callbacks (get_callbacks) and
    # save() are training infrastructure, not part of the forward pass.
    def __init__(self, weight=1.0):
        self.weight = weight

    def __call__(self, render_features, target_rgbs, valid_masks=None):
        n_img = len(render_features)
        masks = list(valid_masks) if valid_masks is not None else [None] * n_img

        same_shape = all(f.shape == render_features[0].shape
                         for f in render_features)
        all_none = all(m is None for m in masks)
        all_masked = (all(m is not None for m in masks)
                      and all(m.shape == masks[0].shape for m in masks))
        per_img_bytes = (render_features[0].size
                         * render_features[0].dtype.itemsize)

        if (n_img > 1 and same_shape and (all_none or all_masked)
                and per_img_bytes <= _FUSE_BYTES_LIMIT):
            # Fused path: one pallas_call for the whole batch.  The stack is a
            # small copy that buys back n_img kernel launches and gives the
            # parallel grid enough blocks to feed both v7x TensorCores.
            pred = jnp.stack(render_features)
            targ = jnp.stack(target_rgbs)
            msk = None if all_none else jnp.stack(masks)
            total = mse_sum(pred, targ, msk)
            # torch .mean() divides by the full element count even when a
            # valid_mask is applied.
            final_loss = total / (n_img * render_features[0].size)
        else:
            rgb_losses = []
            for feat, rgb, m in zip(render_features, target_rgbs, masks):
                rgb_losses.append(mse_sum(feat, rgb, m) / feat.size)
            final_loss = sum(rgb_losses) / n_img
        return {'rgb_loss_mse': self.weight * final_loss}


# ----------------------------- pure-JAX reference ---------------------------- #
def reference_loss(render_features, target_rgbs, valid_masks, weight):
    losses = []
    for i, (f, r) in enumerate(zip(render_features, target_rgbs)):
        l = (f.astype(jnp.float32) - r.astype(jnp.float32)) ** 2
        m = None if valid_masks is None else valid_masks[i]
        if m is not None:
            l = l * m.astype(jnp.float32)
        losses.append(l.mean())
    return {'rgb_loss_mse': weight * (sum(losses) / len(losses))}


if __name__ == "__main__":
    key = jax.random.PRNGKey(0)
    H = W = 16
    C = 3
    n_images = 2
    keys = jax.random.split(key, 8)

    feats = [jax.random.uniform(keys[i], (H, W, C), jnp.float32)
             for i in range(n_images)]
    rgbs = [jax.random.uniform(keys[2 + i], (H, W, C), jnp.float32)
            for i in range(n_images)]
    mask_f32 = (jax.random.uniform(keys[4], (H, W, 1)) > 0.3).astype(jnp.float32)
    mask_bool = jax.random.uniform(keys[5], (H, W, 1)) > 0.5

    loss_mod = RGBLossMSE(weight=1.0)

    def check(out, ref, tag):
        a = float(jax.block_until_ready(out['rgb_loss_mse']))
        b = float(ref['rgb_loss_mse'])
        assert abs(a - b) <= 1e-6 + 1e-5 * abs(b), (tag, a, b)

    # 1) All images masked (equal shapes) -> single fused masked pallas_call.
    vm = [mask_f32, mask_bool]
    check(loss_mod(feats, rgbs, vm), reference_loss(feats, rgbs, vm, 1.0),
          "fused_masked")

    # 2) No masks -> single fused unmasked pallas_call.
    check(loss_mod(feats, rgbs, None), reference_loss(feats, rgbs, None, 1.0),
          "fused_unmasked")

    # 3) Mixed None / present (bool) masks -> per-image fallback path
    #    (exercises the compact int8 mask stream).
    vm = [None, mask_bool]
    check(loss_mod(feats, rgbs, vm), reference_loss(feats, rgbs, vm, 1.0),
          "per_image_mixed")

    # 4) Multi-block grid with a partial tail block and a non-128-aligned size.
    a = jax.random.uniform(keys[6], (50, 60, C), jnp.float32)   # 9000 elements
    b = jax.random.uniform(keys[7], (50, 60, C), jnp.float32)
    got = float(jax.block_until_ready(mse_sum(a, b, block_rows=64)))
    want = float(jnp.sum((a - b) ** 2))
    assert abs(got - want) <= 1e-3 + 1e-4 * abs(want), ("tail_block", got, want)

    # 5) bf16 inputs streamed natively (half the HBM bytes), f32 math in-kernel.
    ab, bb = a.astype(jnp.bfloat16), b.astype(jnp.bfloat16)
    got = float(jax.block_until_ready(mse_sum(ab, bb)))
    want = float(jnp.sum((ab.astype(jnp.float32) - bb.astype(jnp.float32)) ** 2))
    assert abs(got - want) <= 1e-3 + 1e-4 * abs(want), ("bf16", got, want)

    print("KERNEL_OK")
</pallas_src>

<mosaic_0001>
module attributes {stable_mosaic.version = 11 : i64} {
  func.func @kernel(%arg0: i32, %arg1: memref<64x128xf32, #tpu.memory_space<vmem>>, %arg2: memref<64x128xf32, #tpu.memory_space<vmem>>, %arg3: memref<64x128xf32, #tpu.memory_space<vmem>>, %arg4: memref<1x8x128xf32, #tpu.memory_space<vmem>>) attributes {dimension_semantics = [#tpu.dimension_semantics<parallel>], iteration_bounds = array<i64: 1>, scalar_prefetch = 0 : i64, scratch_operands = 0 : i64, tpu.core_type = #tpu.core_type<tc>, window_params = [{transform_indices = @transform_0, window_bounds = array<i64: 64, 128>}, {transform_indices = @transform_1, window_bounds = array<i64: 64, 128>}, {transform_indices = @transform_2, window_bounds = array<i64: 64, 128>}, {transform_indices = @transform_3, window_bounds = array<i64: 1, 8, 128>}]} {
    %cst = arith.constant 0.000000e+00 : f32
    %0 = vector.broadcast %cst : f32 to vector<8x128xf32>
    %c0_i32 = arith.constant 0 : i32
    %c64_i32 = arith.constant 64 : i32
    %1 = arith.muli %c0_i32, %c64_i32 : i32
    %2 = tpu.assume_multiple %1, 64 : i32
    %3 = arith.index_cast %2 : i32 to index
    %c0 = arith.constant 0 : index
    %4 = vector.load %arg1[%3, %c0] : memref<64x128xf32, #tpu.memory_space<vmem>>, vector<64x128xf32>
    %5 = arith.index_cast %2 : i32 to index
    %c0_0 = arith.constant 0 : index
    %6 = vector.load %arg2[%5, %c0_0] : memref<64x128xf32, #tpu.memory_space<vmem>>, vector<64x128xf32>
    %7 = arith.subf %4, %6 : vector<64x128xf32>
    %8 = arith.mulf %7, %7 : vector<64x128xf32>
    %9 = arith.index_cast %2 : i32 to index
    %c0_1 = arith.constant 0 : index
    %10 = vector.load %arg3[%9, %c0_1] : memref<64x128xf32, #tpu.memory_space<vmem>>, vector<64x128xf32>
    %11 = arith.mulf %8, %10 : vector<64x128xf32>
    %12 = vector.shape_cast %11 : vector<64x128xf32> to vector<8x8x128xf32>
    %cst_2 = arith.constant dense<0.000000e+00> : vector<8x128xf32>
    %13 = vector.multi_reduction <add>, %12, %cst_2 [0] : vector<8x8x128xf32> to vector<8x128xf32>
    %14 = arith.addf %0, %13 : vector<8x128xf32>
    %c1_i32 = arith.constant 1 : i32
    %15 = vector.shape_cast %14 : vector<8x128xf32> to vector<1x8x128xf32>
    %c0_3 = arith.constant 0 : index
    %c0_4 = arith.constant 0 : index
    %c0_5 = arith.constant 0 : index
    %16 = vector.load %arg4[%c0_3, %c0_4, %c0_5] : memref<1x8x128xf32, #tpu.memory_space<vmem>>, vector<1x8x128xf32>
    tpu.vector_store %arg4[%c0_3, %c0_4, %c0_5], %15 {strides = array<i32>} : memref<1x8x128xf32, #tpu.memory_space<vmem>>, vector<1x8x128xf32>,
    return
  }
  func.func @transform_0(%arg0: i32) -> (i32, i32) {
    %c0_i32 = arith.constant 0 : i32
    %c0_i32_0 = arith.constant 0 : i32
    return %arg0, %c0_i32 : i32, i32
  }
  func.func @transform_1(%arg0: i32) -> (i32, i32) {
    %c0_i32 = arith.constant 0 : i32
    %c0_i32_0 = arith.constant 0 : i32
    return %arg0, %c0_i32 : i32, i32
  }
  func.func @transform_2(%arg0: i32) -> (i32, i32) {
    %c0_i32 = arith.constant 0 : i32
    %c0_i32_0 = arith.constant 0 : i32
    return %arg0, %c0_i32 : i32, i32
  }
  func.func @transform_3(%arg0: i32) -> (i32, i32, i32) {
    %c0_i32 = arith.constant 0 : i32
    %c0_i32_0 = arith.constant 0 : i32
    %c0_i32_1 = arith.constant 0 : i32
    return %arg0, %c0_i32, %c0_i32_0 : i32, i32, i32
  }
}

</mosaic_0001>

<llo_original>
// kernel: tpu_custom_call.1
$region0: #{tpu_custom_call.1}
  #allocation0 [shape = 'u32[]', space=smem, size = 0x4, offset = 0x4, fixed_abs, tag = 'smem constant byte address 0x4 - core index']
  #allocation1 [shape = 'u32[72,128]{1,0:T(1,128)}', space=vmem, size = 0x9000, scoped, tag = 'internal scratch']
  %s0 = inlined_call_operand.hbm [shape: f32[64,128], index: 0, kind: input, shape index: {}]
  %s1 = inlined_call_operand.hbm [shape: f32[64,128], index: 1, kind: input, shape index: {}]
  %s2 = inlined_call_operand.hbm [shape: f32[64,128], index: 2, kind: input, shape index: {}]
  %s3 = inlined_call_operand.hbm [shape: f32[1,8,128], index: 3, kind: output, shape index: {}]
  %s4 = sld [smem:[#allocation0]]
  $region34: #{tpu_custom_call.1} parent=0
    _
  %s6 = ssub.s32 1, %s4
  %s7 = scalar_select 0, %s6, %s4
  $region1: #{tpu_custom_call.1} parent=0
    #allocation2 [shape = 'u8[32768]{0}', space=vmem, size = 0x8000, scoped, tag = 'input window, operand 0, single buffered']
    #allocation3 [shape = 's32[1]{0}', space=sflag, size = 0x4, scoped, tag = 'scoped memory for tpu_custom_call.1']
    #allocation4 [shape = 's32[1]{0}', space=sflag, size = 0x4, scoped, tag = 'scoped memory for tpu_custom_call.1']
    #allocation5 [shape = 'u8[32768]{0}', space=vmem, size = 0x8000, scoped, tag = 'input window, operand 1, single buffered']
    #allocation6 [shape = 's32[1]{0}', space=sflag, size = 0x4, scoped, tag = 'scoped memory for tpu_custom_call.1']
    #allocation7 [shape = 'u8[32768]{0}', space=vmem, size = 0x8000, scoped, tag = 'input window, operand 2, single buffered']
    #allocation8 [shape = 'u8[4096]{0}', space=vmem, size = 0x1000, scoped, tag = 'output window, operand 0, single buffered']
    %8 = vsyncpa [#allocation3], 0
    %9 = vsyncpa [#allocation6], 0
    %10 = vsyncpa [#allocation4], 0
    // Predicated region
    $region2: #{tpu_custom_call.1} parent=1 // pred_check
      _
    $region3: #{tpu_custom_call.1} parent=1 // pred_check_branch
      %12 = sbr.rel (0) target = $region5
    $region4: #{tpu_custom_call.1} parent=1 // pred_region
      %14 = vsyncadd [#allocation3], 0
      %s15 = sshll.u32 %s0, 4
      %s16 = int_to_ptr.hbm [resolvable:$true] %s15
      %s17 = sshll.u32 [#allocation2], 4
      %s18 = int_to_ptr.vmem [resolvable:$true] %s17
      %23 = dma.hbm_to_vmem [thread:$0]  %s16, 1024, %s18, [#allocation3], 128, 128, 8
    $region5: #{tpu_custom_call.1} parent=1 // pred_fallthru
      _
    // Predicated region
    $region6: #{tpu_custom_call.1} parent=1 // pred_check
      _
    $region7: #{tpu_custom_call.1} parent=1 // pred_check_branch
      %25 = sbr.rel (0) target = $region9
    $region8: #{tpu_custom_call.1} parent=1 // pred_region
      %27 = vsyncadd [#allocation6], 0
      %s28 = sshll.u32 %s1, 4
      %s29 = int_to_ptr.hbm [resolvable:$true] %s28
      %s30 = sshll.u32 [#allocation5], 4
      %s31 = int_to_ptr.vmem [resolvable:$true] %s30
      %36 = dma.hbm_to_vmem [thread:$0]  %s29, 1024, %s31, [#allocation6], 128, 128, 8
    $region9: #{tpu_custom_call.1} parent=1 // pred_fallthru
      _
    // Predicated region
    $region10: #{tpu_custom_call.1} parent=1 // pred_check
      _
    $region11: #{tpu_custom_call.1} parent=1 // pred_check_branch
      %38 = sbr.rel (0) target = $region13
    $region12: #{tpu_custom_call.1} parent=1 // pred_region
      %40 = vsyncadd [#allocation6], 0
      %s41 = sshll.u32 %s2, 4
      %s42 = int_to_ptr.hbm [resolvable:$true] %s41
      %s43 = sshll.u32 [#allocation7], 4
      %s44 = int_to_ptr.vmem [resolvable:$true] %s43
      %49 = dma.hbm_to_vmem [thread:$0]  %s42, 1024, %s44, [#allocation6], 128, 128, 8
    $region13: #{tpu_custom_call.1} parent=1 // pred_fallthru
      _
    // Predicated region
    $region14: #{tpu_custom_call.1} parent=1 // pred_check
      _
    $region15: #{tpu_custom_call.1} parent=1 // pred_check_branch
      %51 = sbr.rel (0) target = $region17
    $region16: #{tpu_custom_call.1} parent=1 // pred_region
      %53 = dma.done [#allocation3], 1024
    $region17: #{tpu_custom_call.1} parent=1 // pred_fallthru
      _
    // Predicated region
    $region18: #{tpu_custom_call.1} parent=1 // pred_check
      _
    $region19: #{tpu_custom_call.1} parent=1 // pred_check_branch
      %55 = sbr.rel (0) target = $region21
    $region20: #{tpu_custom_call.1} parent=1 // pred_region
      %57 = dma.done [#allocation6], 1024
    $region21: #{tpu_custom_call.1} parent=1 // pred_fallthru
      _
    // Predicated region
    $region22: #{tpu_custom_call.1} parent=1 // pred_check
      _
    $region23: #{tpu_custom_call.1} parent=1 // pred_check_branch
      %59 = sbr.rel (0) target = $region25
    $region24: #{tpu_custom_call.1} parent=1 // pred_region
      %61 = dma.done [#allocation6], 1024
    $region25: #{tpu_custom_call.1} parent=1 // pred_fallthru
      _
    %v62 = vld [vmem:[#allocation2] sm:$0xff]
    %v63 = vld [vmem:[#allocation2 + $0x8] sm:$0xff]
    %v64 = vld [vmem:[#allocation2 + $0x10] sm:$0xff]
    %v65 = vld [vmem:[#allocation2 + $0x18] sm:$0xff]
    %v66 = vld [vmem:[#allocation2 + $0x20] sm:$0xff]
    %v67 = vld [vmem:[#allocation2 + $0x28] sm:$0xff]
    %v68 = vld [vmem:[#allocation2 + $0x30] sm:$0xff]
    %v69 = vld [vmem:[#allocation2 + $0x38] sm:$0xff]
    %v70 = vld [vmem:[#allocation5] sm:$0xff]
    %v71 = vld [vmem:[#allocation5 + $0x8] sm:$0xff]
    %v72 = vld [vmem:[#allocation5 + $0x10] sm:$0xff]
    %v73 = vld [vmem:[#allocation5 + $0x18] sm:$0xff]
    %v74 = vld [vmem:[#allocation5 + $0x20] sm:$0xff]
    %v75 = vld [vmem:[#allocation5 + $0x28] sm:$0xff]
    %v76 = vld [vmem:[#allocation5 + $0x30] sm:$0xff]
    %v77 = vld [vmem:[#allocation5 + $0x38] sm:$0xff]
    %v78 = vsub.f32 %v62, %v70
    %v79 = vsub.f32 %v63, %v71
    %v80 = vsub.f32 %v64, %v72
    %v81 = vsub.f32 %v65, %v73
    %v82 = vsub.f32 %v66, %v74
    %v83 = vsub.f32 %v67, %v75
    %v84 = vsub.f32 %v68, %v76
    %v85 = vsub.f32 %v69, %v77
    %v86 = vmul.f32 %v78, %v78
    %v87 = vmul.f32 %v79, %v79
    %v88 = vmul.f32 %v80, %v80
    %v89 = vmul.f32 %v81, %v81
    %v90 = vmul.f32 %v82, %v82
    %v91 = vmul.f32 %v83, %v83
    %v92 = vmul.f32 %v84, %v84
    %v93 = vmul.f32 %v85, %v85
    %v94 = vld [vmem:[#allocation7] sm:$0xff]
    %v95 = vld [vmem:[#allocation7 + $0x8] sm:$0xff]
    %v96 = vld [vmem:[#allocation7 + $0x10] sm:$0xff]
    %v97 = vld [vmem:[#allocation7 + $0x18] sm:$0xff]
    %v98 = vld [vmem:[#allocation7 + $0x20] sm:$0xff]
    %v99 = vld [vmem:[#allocation7 + $0x28] sm:$0xff]
    %v100 = vld [vmem:[#allocation7 + $0x30] sm:$0xff]
    %v101 = vld [vmem:[#allocation7 + $0x38] sm:$0xff]
    %v102 = vmul.f32 %v86, %v94
    %v103 = vmul.f32 %v87, %v95
    %v104 = vmul.f32 %v88, %v96
    %v105 = vmul.f32 %v89, %v97
    %v106 = vmul.f32 %v90, %v98
    %v107 = vmul.f32 %v91, %v99
    %v108 = vmul.f32 %v92, %v100
    %v109 = vmul.f32 %v93, %v101
    %v110 = vadd.f32 %v102, %v103
    %v111 = vadd.f32 %v110, %v104
    %v112 = vadd.f32 %v111, %v105
    %v113 = vadd.f32 %v112, %v106
    %v114 = vadd.f32 %v113, %v107
    %v115 = vadd.f32 %v114, %v108
    %v116 = vadd.f32 %v115, %v109
    %v117 = vadd.f32 %v116, 0.0
    %118 = vst [vmem:[#allocation8] sm:$0xff] %v117
    // Predicated region
    $region26: #{tpu_custom_call.1} parent=1 // pred_check
      _
    $region27: #{tpu_custom_call.1} parent=1 // pred_check_branch
      %120 = sbr.rel (0) target = $region29
    $region28: #{tpu_custom_call.1} parent=1 // pred_region
      %122 = vsyncadd [#allocation4], 0
      %s124 = sshll.u32 [#allocation8], 4
      %s125 = int_to_ptr.vmem [resolvable:$true] %s124
      %s126 = sshll.u32 %s3, 4
      %s127 = int_to_ptr.hbm [resolvable:$true] %s126
      %129 = dma.vmem_to_hbm [thread:$0]  %s125, 128, %s127, [#allocation4]
    $region29: #{tpu_custom_call.1} parent=1 // pred_fallthru
      _
    // Predicated region
    $region30: #{tpu_custom_call.1} parent=1 // pred_check
      _
    $region31: #{tpu_custom_call.1} parent=1 // pred_check_branch
      %131 = sbr.rel (0) target = $region33
    $region32: #{tpu_custom_call.1} parent=1 // pred_region
      %133 = dma.done [#allocation4], 128
    $region33: #{tpu_custom_call.1} parent=1 // pred_fallthru
      _
    %134 = vsyncpa [#allocation3], 1
    %135 = vsyncpa [#allocation6], 1
    %136 = vsyncpa [#allocation4], 1

</llo_original>
